<compile_context>
chip_gen: v7x
topology: tpu7x:2x2x1
jax: 0.10.0
libtpu: 0.0.40
codegen_flags: <defaults>
</compile_context>

<pallas_src>
import functools

import jax
import jax.numpy as jnp
import numpy as np
from jax.experimental import pallas as pl
from jax.experimental.pallas import tpu as pltpu

KH = KW = 5      # kernel_size=5 (module default)
LANES = 128      # TPU lane width


def _set_conv_fused_kernel(lhs_ref, w_ref, g_ref, be_ref, o_ref,
                           *, n, ho, wp, po_h, po_w):
    """Fused Conv2d(5x5, valid) + bias + ReLU + MaxPool2d(5x5, s=1) + BatchNorm2d.

    lhs_ref : (N, ho, wp, 128)  im2col patches (+ ones column for bias),
                                contraction zero-padded to 128 lanes,
                                wp = wo rounded up to the f32 sublane (8).
    w_ref   : (128, 128)        folded conv weight; row KH*KW*Cin holds bias.
    g_ref / be_ref : (1, 128)   BatchNorm gamma / beta (zero-padded).
    o_ref   : (N, po_h, po_w, 128) normalized output (lane-dense store).
    """
    m = n * ho * wp

    # ---- Conv2d + bias as ONE MXU matmul (layout-trivial reshapes: wp % 8 == 0)
    conv = jnp.dot(lhs_ref[...].reshape(m, LANES), w_ref[...],
                   preferred_element_type=jnp.float32)

    # ---- ReLU (traced value, no scratch round-trip) -------------------------
    y = jnp.maximum(conv, jnp.float32(0.0)).reshape(n, ho, wp, LANES)

    # ---- MaxPool2d(k=5, s=1, p=0), separable: 4 row maxes + 4 column maxes --
    t = y[:, 0:po_h, :, :]
    for dy in range(1, KH):
        t = jnp.maximum(t, y[:, dy:dy + po_h, :, :])
    p = t[:, :, 0:po_w, :]
    for dx in range(1, KW):
        p = jnp.maximum(p, t[:, :, dx:dx + po_w, :])      # (n, po_h, po_w, 128)

    # ---- BatchNorm2d: training-mode biased batch stats over (N, H, W) -------
    cnt = n * po_h * po_w
    mean = jnp.sum(p, axis=(0, 1, 2), keepdims=True) * jnp.float32(1.0 / cnt)
    d = p - mean
    var = jnp.sum(d * d, axis=(0, 1, 2), keepdims=True) * jnp.float32(1.0 / cnt)
    inv = jax.lax.rsqrt(var + jnp.float32(1e-5))
    o_ref[...] = (d * inv * g_ref[0] + be_ref[0]).astype(o_ref.dtype)


def set_conv_forward(x_nchw, w, b, gamma, beta):
    """Forward pass of set_conv (defaults: k=5, ReLU, pooling=True, batch_norm=True, stride=1)."""
    N, Cin, H, W = x_nchw.shape
    Cout = w.shape[0]
    ho, wo = H - KH + 1, W - KW + 1            # conv 'VALID' output
    po_h, po_w = ho - KH + 1, wo - KW + 1      # maxpool 'VALID' output

    k_real = KH * KW * Cin
    assert k_real + 1 <= LANES, "im2col contraction (+bias) must fit 128 lanes"
    wp = -(-wo // 8) * 8                       # pad conv-output W to sublane multiple

    # NHWC input, f32.
    x = jnp.transpose(x_nchw, (0, 2, 3, 1)).astype(jnp.float32)

    # Wrapper-side (XLA) im2col: every (n, oh, ow) row is the flattened 5x5xCin
    # patch plus a constant-1 column so the bias is folded into the matmul.
    patches = [x[:, dy:dy + ho, dx:dx + wo, :]
               for dy in range(KH) for dx in range(KW)]
    lhs = jnp.concatenate(
        patches + [jnp.ones((N, ho, wo, 1), jnp.float32)], axis=-1)
    lhs = jnp.pad(lhs, ((0, 0), (0, 0), (0, wp - wo),
                        (0, LANES - (k_real + 1))))        # (N, ho, wp, 128)

    # (Cout, Cin, KH, KW) -> (KH, KW, Cin, Cout) flattened to match patch order;
    # bias lives in row k_real.  Single 128x128 weight = 64 KiB.
    w_mat = jnp.transpose(w, (2, 3, 1, 0)).reshape(k_real, Cout).astype(jnp.float32)
    w_full = jnp.zeros((LANES, LANES), jnp.float32)
    w_full = w_full.at[:k_real, :Cout].set(w_mat)
    w_full = w_full.at[k_real, :Cout].set(b.astype(jnp.float32))

    g_p = jnp.zeros((1, LANES), jnp.float32).at[0, :Cout].set(gamma.astype(jnp.float32))
    be_p = jnp.zeros((1, LANES), jnp.float32).at[0, :Cout].set(beta.astype(jnp.float32))

    kernel = functools.partial(_set_conv_fused_kernel,
                               n=N, ho=ho, wp=wp, po_h=po_h, po_w=po_w)

    out_p = pl.pallas_call(
        kernel,
        out_shape=jax.ShapeDtypeStruct((N, po_h, po_w, LANES), jnp.float32),
        grid_spec=pltpu.PrefetchScalarGridSpec(
            num_scalar_prefetch=0,
            grid=(1,),
            in_specs=[
                pl.BlockSpec((N, ho, wp, LANES), lambda i: (0, 0, 0, 0)),
                pl.BlockSpec((LANES, LANES), lambda i: (0, 0)),
                pl.BlockSpec((1, LANES), lambda i: (0, 0)),
                pl.BlockSpec((1, LANES), lambda i: (0, 0)),
            ],
            out_specs=pl.BlockSpec((N, po_h, po_w, LANES),
                                   lambda i: (0, 0, 0, 0)),
        ),
        compiler_params=pltpu.CompilerParams(
            dimension_semantics=("arbitrary",),
            vmem_limit_bytes=32 * 1024 * 1024),   # guardrail: fits v7x's 64 MiB VMEM
    )(lhs, w_full, g_p, be_p)

    # Slice off channel padding, back to NCHW (tiny XLA epilogue).
    return jnp.transpose(out_p[..., :Cout], (0, 3, 1, 2))


def reference_forward(x_nchw, w, b, gamma, beta):
    """Pure-JAX reference mirroring the PyTorch module's forward."""
    y = jax.lax.conv_general_dilated(
        x_nchw, w, window_strides=(1, 1), padding="VALID",
        dimension_numbers=("NCHW", "OIHW", "NCHW"))
    y = y + b.reshape(1, -1, 1, 1)
    y = jnp.maximum(y, 0.0)
    y = jax.lax.reduce_window(y, -jnp.inf, jax.lax.max,
                              (1, 1, KH, KW), (1, 1, 1, 1), "VALID")
    mean = jnp.mean(y, axis=(0, 2, 3), keepdims=True)
    var = jnp.mean((y - mean) ** 2, axis=(0, 2, 3), keepdims=True)
    y = (y - mean) * jax.lax.rsqrt(var + 1e-5)
    return y * gamma.reshape(1, -1, 1, 1) + beta.reshape(1, -1, 1, 1)


if __name__ == "__main__":
    # repr_size_in=4, repr_size_out=8, input (2, 4, 16, 16)
    N, Cin, Cout, H, W = 2, 4, 8, 16, 16

    key = jax.random.PRNGKey(0)
    kx, kw_, kb = jax.random.split(key, 3)
    x = jax.random.normal(kx, (N, Cin, H, W), dtype=jnp.float32)
    w = jax.random.normal(kw_, (Cout, Cin, KH, KW), dtype=jnp.float32) * 0.1
    b = jax.random.normal(kb, (Cout,), dtype=jnp.float32) * 0.1
    gamma = jnp.ones((Cout,), dtype=jnp.float32)   # BatchNorm2d default weight
    beta = jnp.zeros((Cout,), dtype=jnp.float32)   # BatchNorm2d default bias

    out = set_conv_forward(x, w, b, gamma, beta)
    out = jax.block_until_ready(out)

    ref = jax.block_until_ready(reference_forward(x, w, b, gamma, beta))
    np.testing.assert_allclose(np.asarray(out), np.asarray(ref), rtol=1e-4, atol=1e-4)
    assert out.shape == (N, Cout, 8, 8), out.shape

    print("KERNEL_OK")
</pallas_src>

<mosaic_0001>
module attributes {stable_mosaic.version = 11 : i64} {
  func.func @_set_conv_fused_kernel(%arg0: i32, %arg1: memref<2x12x16x128xf32, #tpu.memory_space<vmem>>, %arg2: memref<128x128xf32, #tpu.memory_space<vmem>>, %arg3: memref<1x128xf32, #tpu.memory_space<vmem>>, %arg4: memref<1x128xf32, #tpu.memory_space<vmem>>, %arg5: memref<2x8x8x128xf32, #tpu.memory_space<vmem>>) attributes {dimension_semantics = [#tpu.dimension_semantics<arbitrary>], iteration_bounds = array<i64: 1>, scalar_prefetch = 0 : i64, scratch_operands = 0 : i64, tpu.core_type = #tpu.core_type<tc>, window_params = [{pipeline_mode = #tpu.pipeline_mode<synchronous>, transform_indices = @transform_0, window_bounds = array<i64: 2, 12, 16, 128>}, {pipeline_mode = #tpu.pipeline_mode<synchronous>, transform_indices = @transform_1, window_bounds = array<i64: 128, 128>}, {pipeline_mode = #tpu.pipeline_mode<synchronous>, transform_indices = @transform_2, window_bounds = array<i64: 1, 128>}, {pipeline_mode = #tpu.pipeline_mode<synchronous>, transform_indices = @transform_3, window_bounds = array<i64: 1, 128>}, {pipeline_mode = #tpu.pipeline_mode<synchronous>, transform_indices = @transform_4, window_bounds = array<i64: 2, 8, 8, 128>}]} {
    %c0 = arith.constant 0 : index
    %c0_0 = arith.constant 0 : index
    %c0_1 = arith.constant 0 : index
    %c0_2 = arith.constant 0 : index
    %0 = vector.load %arg1[%c0, %c0_0, %c0_1, %c0_2] : memref<2x12x16x128xf32, #tpu.memory_space<vmem>>, vector<2x12x16x128xf32>
    %1 = vector.shape_cast %0 : vector<2x12x16x128xf32> to vector<384x128xf32>
    %c0_3 = arith.constant 0 : index
    %c0_4 = arith.constant 0 : index
    %2 = vector.load %arg2[%c0_3, %c0_4] : memref<128x128xf32, #tpu.memory_space<vmem>>, vector<128x128xf32>
    %cst = arith.constant dense<0.000000e+00> : vector<384x128xf32>
    %3 = tpu.matmul %1, %2, %cst {dimension_numbers = #tpu.dot_dimension_numbers<[1], [0], [0], [1], [0, 0, 1, 1], [], []>} : vector<384x128xf32>, vector<128x128xf32>, vector<384x128xf32> -> vector<384x128xf32>
    %cst_5 = arith.constant 0.000000e+00 : f32
    %4 = vector.broadcast %cst_5 : f32 to vector<384x128xf32>
    %5 = arith.maximumf %3, %4 : vector<384x128xf32>
    %6 = vector.shape_cast %5 : vector<384x128xf32> to vector<2x12x16x128xf32>
    %7 = vector.extract_strided_slice %6 {offsets = [0, 0, 0, 0], sizes = [2, 8, 16, 128], strides = [1, 1, 1, 1]} : vector<2x12x16x128xf32> to vector<2x8x16x128xf32>
    %8 = vector.extract_strided_slice %6 {offsets = [0, 1, 0, 0], sizes = [2, 8, 16, 128], strides = [1, 1, 1, 1]} : vector<2x12x16x128xf32> to vector<2x8x16x128xf32>
    %9 = arith.maximumf %7, %8 : vector<2x8x16x128xf32>
    %10 = vector.extract_strided_slice %6 {offsets = [0, 2, 0, 0], sizes = [2, 8, 16, 128], strides = [1, 1, 1, 1]} : vector<2x12x16x128xf32> to vector<2x8x16x128xf32>
    %11 = arith.maximumf %9, %10 : vector<2x8x16x128xf32>
    %12 = vector.extract_strided_slice %6 {offsets = [0, 3, 0, 0], sizes = [2, 8, 16, 128], strides = [1, 1, 1, 1]} : vector<2x12x16x128xf32> to vector<2x8x16x128xf32>
    %13 = arith.maximumf %11, %12 : vector<2x8x16x128xf32>
    %14 = vector.extract_strided_slice %6 {offsets = [0, 4, 0, 0], sizes = [2, 8, 16, 128], strides = [1, 1, 1, 1]} : vector<2x12x16x128xf32> to vector<2x8x16x128xf32>
    %15 = arith.maximumf %13, %14 : vector<2x8x16x128xf32>
    %16 = vector.extract_strided_slice %15 {offsets = [0, 0, 0, 0], sizes = [2, 8, 8, 128], strides = [1, 1, 1, 1]} : vector<2x8x16x128xf32> to vector<2x8x8x128xf32>
    %17 = vector.extract_strided_slice %15 {offsets = [0, 0, 1, 0], sizes = [2, 8, 8, 128], strides = [1, 1, 1, 1]} : vector<2x8x16x128xf32> to vector<2x8x8x128xf32>
    %18 = arith.maximumf %16, %17 : vector<2x8x8x128xf32>
    %19 = vector.extract_strided_slice %15 {offsets = [0, 0, 2, 0], sizes = [2, 8, 8, 128], strides = [1, 1, 1, 1]} : vector<2x8x16x128xf32> to vector<2x8x8x128xf32>
    %20 = arith.maximumf %18, %19 : vector<2x8x8x128xf32>
    %21 = vector.extract_strided_slice %15 {offsets = [0, 0, 3, 0], sizes = [2, 8, 8, 128], strides = [1, 1, 1, 1]} : vector<2x8x16x128xf32> to vector<2x8x8x128xf32>
    %22 = arith.maximumf %20, %21 : vector<2x8x8x128xf32>
    %23 = vector.extract_strided_slice %15 {offsets = [0, 0, 4, 0], sizes = [2, 8, 8, 128], strides = [1, 1, 1, 1]} : vector<2x8x16x128xf32> to vector<2x8x8x128xf32>
    %24 = arith.maximumf %22, %23 : vector<2x8x8x128xf32>
    %cst_6 = arith.constant dense<0.000000e+00> : vector<128xf32>
    %25 = vector.multi_reduction <add>, %24, %cst_6 [0, 1, 2] : vector<2x8x8x128xf32> to vector<128xf32>
    %26 = vector.shape_cast %25 : vector<128xf32> to vector<1x1x1x128xf32>
    %cst_7 = arith.constant 7.812500e-03 : f32
    %27 = vector.broadcast %cst_7 : f32 to vector<1x1x1x128xf32>
    %28 = arith.mulf %26, %27 : vector<1x1x1x128xf32>
    %29 = vector.broadcast %28 : vector<1x1x1x128xf32> to vector<2x8x8x128xf32>
    %30 = arith.subf %24, %29 : vector<2x8x8x128xf32>
    %31 = arith.mulf %30, %30 : vector<2x8x8x128xf32>
    %cst_8 = arith.constant dense<0.000000e+00> : vector<128xf32>
    %32 = vector.multi_reduction <add>, %31, %cst_8 [0, 1, 2] : vector<2x8x8x128xf32> to vector<128xf32>
    %33 = vector.shape_cast %32 : vector<128xf32> to vector<1x1x1x128xf32>
    %cst_9 = arith.constant 7.812500e-03 : f32
    %34 = vector.broadcast %cst_9 : f32 to vector<1x1x1x128xf32>
    %35 = arith.mulf %33, %34 : vector<1x1x1x128xf32>
    %cst_10 = arith.constant 9.99999974E-6 : f32
    %36 = vector.broadcast %cst_10 : f32 to vector<1x1x1x128xf32>
    %37 = arith.addf %35, %36 : vector<1x1x1x128xf32>
    %38 = math.rsqrt %37 : vector<1x1x1x128xf32>
    %39 = vector.broadcast %38 : vector<1x1x1x128xf32> to vector<2x8x8x128xf32>
    %40 = arith.mulf %30, %39 : vector<2x8x8x128xf32>
    %c0_11 = arith.constant 0 : index
    %c0_12 = arith.constant 0 : index
    %41 = vector.load %arg3[%c0_11, %c0_12] : memref<1x128xf32, #tpu.memory_space<vmem>>, vector<1x128xf32>
    %42 = vector.shape_cast %41 : vector<1x128xf32> to vector<128xf32>
    %43 = vector.shape_cast %42 : vector<128xf32> to vector<1x1x1x128xf32>
    %44 = vector.broadcast %43 : vector<1x1x1x128xf32> to vector<2x8x8x128xf32>
    %45 = arith.mulf %40, %44 : vector<2x8x8x128xf32>
    %c0_13 = arith.constant 0 : index
    %c0_14 = arith.constant 0 : index
    %46 = vector.load %arg4[%c0_13, %c0_14] : memref<1x128xf32, #tpu.memory_space<vmem>>, vector<1x128xf32>
    %47 = vector.shape_cast %46 : vector<1x128xf32> to vector<128xf32>
    %48 = vector.shape_cast %47 : vector<128xf32> to vector<1x1x1x128xf32>
    %49 = vector.broadcast %48 : vector<1x1x1x128xf32> to vector<2x8x8x128xf32>
    %50 = arith.addf %45, %49 : vector<2x8x8x128xf32>
    %c0_15 = arith.constant 0 : index
    %c0_16 = arith.constant 0 : index
    %c0_17 = arith.constant 0 : index
    %c0_18 = arith.constant 0 : index
    %51 = vector.load %arg5[%c0_15, %c0_16, %c0_17, %c0_18] : memref<2x8x8x128xf32, #tpu.memory_space<vmem>>, vector<2x8x8x128xf32>
    tpu.vector_store %arg5[%c0_15, %c0_16, %c0_17, %c0_18], %50 {strides = array<i32>} : memref<2x8x8x128xf32, #tpu.memory_space<vmem>>, vector<2x8x8x128xf32>,
    return
  }
  func.func @transform_0(%arg0: i32) -> (i32, i32, i32, i32) {
    %c0_i32 = arith.constant 0 : i32
    %c0_i32_0 = arith.constant 0 : i32
    %c0_i32_1 = arith.constant 0 : i32
    %c0_i32_2 = arith.constant 0 : i32
    %c0_i32_3 = arith.constant 0 : i32
    return %c0_i32, %c0_i32_0, %c0_i32_1, %c0_i32_2 : i32, i32, i32, i32
  }
  func.func @transform_1(%arg0: i32) -> (i32, i32) {
    %c0_i32 = arith.constant 0 : i32
    %c0_i32_0 = arith.constant 0 : i32
    %c0_i32_1 = arith.constant 0 : i32
    return %c0_i32, %c0_i32_0 : i32, i32
  }
  func.func @transform_2(%arg0: i32) -> (i32, i32) {
    %c0_i32 = arith.constant 0 : i32
    %c0_i32_0 = arith.constant 0 : i32
    %c0_i32_1 = arith.constant 0 : i32
    return %c0_i32, %c0_i32_0 : i32, i32
  }
  func.func @transform_3(%arg0: i32) -> (i32, i32) {
    %c0_i32 = arith.constant 0 : i32
    %c0_i32_0 = arith.constant 0 : i32
    %c0_i32_1 = arith.constant 0 : i32
    return %c0_i32, %c0_i32_0 : i32, i32
  }
  func.func @transform_4(%arg0: i32) -> (i32, i32, i32, i32) {
    %c0_i32 = arith.constant 0 : i32
    %c0_i32_0 = arith.constant 0 : i32
    %c0_i32_1 = arith.constant 0 : i32
    %c0_i32_2 = arith.constant 0 : i32
    %c0_i32_3 = arith.constant 0 : i32
    return %c0_i32, %c0_i32_0, %c0_i32_1, %c0_i32_2 : i32, i32, i32, i32
  }
}

</mosaic_0001>

<llo_original>
// kernel: tpu_custom_call.1
$region0: #{tpu_custom_call.1}
  #allocation0 [shape = 'u32[]', space=smem, size = 0x4, offset = 0x4, fixed_abs, tag = 'smem constant byte address 0x4 - core index']
  #allocation1 [shape = 'u32[144,128]{1,0:T(1,128)}', space=vmem, size = 0x12000, scoped, tag = 'internal scratch']
  %s0 = inlined_call_operand.hbm [shape: f32[2,12,16,128], index: 0, kind: input, shape index: {}]
  %s1 = inlined_call_operand.hbm [shape: f32[128,128], index: 1, kind: input, shape index: {}]
  %s2 = inlined_call_operand.vmem [shape: f32[1,128], index: 2, kind: input, shape index: {}]
  %s3 = inlined_call_operand.vmem [shape: f32[1,128], index: 3, kind: input, shape index: {}]
  %s4 = inlined_call_operand.hbm [shape: f32[2,8,8,128], index: 4, kind: output, shape index: {}]
  %s5 = sld [smem:[#allocation0]]
  $region34: #{tpu_custom_call.1} parent=0
    _
  %s7 = ssub.s32 1, %s5
  %s8 = scalar_select 0, %s7, %s5
  $region1: #{tpu_custom_call.1} parent=0
    #allocation2 [shape = 'u8[196608]{0}', space=vmem, size = 0x30000, scoped, tag = 'input window, operand 0, single buffered']
    #allocation3 [shape = 's32[1]{0}', space=sflag, size = 0x4, scoped, tag = 'scoped memory for tpu_custom_call.1']
    #allocation4 [shape = 's32[1]{0}', space=sflag, size = 0x4, scoped, tag = 'scoped memory for tpu_custom_call.1']
    #allocation5 [shape = 'u8[65536]{0}', space=vmem, size = 0x10000, scoped, tag = 'input window, operand 1, single buffered']
    #allocation6 [shape = 's32[1]{0}', space=sflag, size = 0x4, scoped, tag = 'scoped memory for tpu_custom_call.1']
    #allocation7 [shape = 'u8[65536]{0}', space=vmem, size = 0x10000, scoped, tag = 'output window, operand 0, single buffered']
    %9 = vsyncpa [#allocation3], 0
    %10 = vsyncpa [#allocation6], 0
    %11 = vsyncpa [#allocation4], 0
    // Predicated region
    $region2: #{tpu_custom_call.1} parent=1 // pred_check
      _
    $region3: #{tpu_custom_call.1} parent=1 // pred_check_branch
      %13 = sbr.rel (0) target = $region5
    $region4: #{tpu_custom_call.1} parent=1 // pred_region
      %s15 = ssub.s32 6144, 6144
      %16 = vsyncadd [#allocation3], %s15
      %s17 = sshll.u32 [#allocation2], 4
      %s18 = int_to_ptr.vmem [resolvable:$true] %s17
      %23 = dma.hbm_to_vmem [thread:$0]  %s0, 6144, %s18, [#allocation3], 128, 128, 8
    $region5: #{tpu_custom_call.1} parent=1 // pred_fallthru
      _
    // Predicated region
    $region6: #{tpu_custom_call.1} parent=1 // pred_check
      _
    $region7: #{tpu_custom_call.1} parent=1 // pred_check_branch
      %25 = sbr.rel (0) target = $region9
    $region8: #{tpu_custom_call.1} parent=1 // pred_region
      %s27 = ssub.s32 2048, 2048
      %28 = vsyncadd [#allocation6], %s27
      %s29 = sshll.u32 [#allocation5], 4
      %s30 = int_to_ptr.vmem [resolvable:$true] %s29
      %35 = dma.hbm_to_vmem [thread:$0]  %s1, 2048, %s30, [#allocation6], 128, 128, 8
    $region9: #{tpu_custom_call.1} parent=1 // pred_fallthru
      _
    // Predicated region
    $region10: #{tpu_custom_call.1} parent=1 // pred_check
      _
    $region11: #{tpu_custom_call.1} parent=1 // pred_check_branch
      %37 = sbr.rel (0) target = $region13
    $region12: #{tpu_custom_call.1} parent=1 // pred_region
      _
    $region13: #{tpu_custom_call.1} parent=1 // pred_fallthru
      _
    // Predicated region
    $region14: #{tpu_custom_call.1} parent=1 // pred_check
      _
    $region15: #{tpu_custom_call.1} parent=1 // pred_check_branch
      %39 = sbr.rel (0) target = $region17
    $region16: #{tpu_custom_call.1} parent=1 // pred_region
      _
    $region17: #{tpu_custom_call.1} parent=1 // pred_fallthru
      _
    // Predicated region
    $region18: #{tpu_custom_call.1} parent=1 // pred_check
      _
    $region19: #{tpu_custom_call.1} parent=1 // pred_check_branch
      %41 = sbr.rel (0) target = $region21
    $region20: #{tpu_custom_call.1} parent=1 // pred_region
      %42 = dma.done [#allocation3], 6144
    $region21: #{tpu_custom_call.1} parent=1 // pred_fallthru
      _
    // Predicated region
    $region22: #{tpu_custom_call.1} parent=1 // pred_check
      _
    $region23: #{tpu_custom_call.1} parent=1 // pred_check_branch
      %44 = sbr.rel (0) target = $region25
    $region24: #{tpu_custom_call.1} parent=1 // pred_region
      %45 = dma.done [#allocation6], 2048
    $region25: #{tpu_custom_call.1} parent=1 // pred_fallthru
      _
    %v46 = vld [vmem:[#allocation2] sm:$0xff]
    %v47 = vld [vmem:[#allocation2 + $0x8] sm:$0xff]
    %v48 = vld [vmem:[#allocation2 + $0x10] sm:$0xff]
    %v49 = vld [vmem:[#allocation2 + $0x18] sm:$0xff]
    %v50 = vld [vmem:[#allocation2 + $0x20] sm:$0xff]
    %v51 = vld [vmem:[#allocation2 + $0x28] sm:$0xff]
    %v52 = vld [vmem:[#allocation2 + $0x30] sm:$0xff]
    %v53 = vld [vmem:[#allocation2 + $0x38] sm:$0xff]
    %v54 = vld [vmem:[#allocation2 + $0x40] sm:$0xff]
    %v55 = vld [vmem:[#allocation2 + $0x48] sm:$0xff]
    %v56 = vld [vmem:[#allocation2 + $0x50] sm:$0xff]
    %v57 = vld [vmem:[#allocation2 + $0x58] sm:$0xff]
    %v58 = vld [vmem:[#allocation2 + $0x60] sm:$0xff]
    %v59 = vld [vmem:[#allocation2 + $0x68] sm:$0xff]
    %v60 = vld [vmem:[#allocation2 + $0x70] sm:$0xff]
    %v61 = vld [vmem:[#allocation2 + $0x78] sm:$0xff]
    %v62 = vld [vmem:[#allocation2 + $0x80] sm:$0xff]
    %v63 = vld [vmem:[#allocation2 + $0x88] sm:$0xff]
    %v64 = vld [vmem:[#allocation2 + $0x90] sm:$0xff]
    %v65 = vld [vmem:[#allocation2 + $0x98] sm:$0xff]
    %v66 = vld [vmem:[#allocation2 + $0xa0] sm:$0xff]
    %v67 = vld [vmem:[#allocation2 + $0xa8] sm:$0xff]
    %v68 = vld [vmem:[#allocation2 + $0xb0] sm:$0xff]
    %v69 = vld [vmem:[#allocation2 + $0xb8] sm:$0xff]
    %v70 = vld [vmem:[#allocation2 + $0xc0] sm:$0xff]
    %v71 = vld [vmem:[#allocation2 + $0xc8] sm:$0xff]
    %v72 = vld [vmem:[#allocation2 + $0xd0] sm:$0xff]
    %v73 = vld [vmem:[#allocation2 + $0xd8] sm:$0xff]
    %v74 = vld [vmem:[#allocation2 + $0xe0] sm:$0xff]
    %v75 = vld [vmem:[#allocation2 + $0xe8] sm:$0xff]
    %v76 = vld [vmem:[#allocation2 + $0xf0] sm:$0xff]
    %v77 = vld [vmem:[#allocation2 + $0xf8] sm:$0xff]
    %v78 = vld [vmem:[#allocation2 + $0x100] sm:$0xff]
    %v79 = vld [vmem:[#allocation2 + $0x108] sm:$0xff]
    %v80 = vld [vmem:[#allocation2 + $0x110] sm:$0xff]
    %v81 = vld [vmem:[#allocation2 + $0x118] sm:$0xff]
    %v82 = vld [vmem:[#allocation2 + $0x120] sm:$0xff]
    %v83 = vld [vmem:[#allocation2 + $0x128] sm:$0xff]
    %v84 = vld [vmem:[#allocation2 + $0x130] sm:$0xff]
    %v85 = vld [vmem:[#allocation2 + $0x138] sm:$0xff]
    %v86 = vld [vmem:[#allocation2 + $0x140] sm:$0xff]
    %v87 = vld [vmem:[#allocation2 + $0x148] sm:$0xff]
    %v88 = vld [vmem:[#allocation2 + $0x150] sm:$0xff]
    %v89 = vld [vmem:[#allocation2 + $0x158] sm:$0xff]
    %v90 = vld [vmem:[#allocation2 + $0x160] sm:$0xff]
    %v91 = vld [vmem:[#allocation2 + $0x168] sm:$0xff]
    %v92 = vld [vmem:[#allocation2 + $0x170] sm:$0xff]
    %v93 = vld [vmem:[#allocation2 + $0x178] sm:$0xff]
    %v94 = vld [vmem:[#allocation5] sm:$0xff]
    %v95 = vld [vmem:[#allocation5 + $0x8] sm:$0xff]
    %v96 = vld [vmem:[#allocation5 + $0x10] sm:$0xff]
    %v97 = vld [vmem:[#allocation5 + $0x18] sm:$0xff]
    %v98 = vld [vmem:[#allocation5 + $0x20] sm:$0xff]
    %v99 = vld [vmem:[#allocation5 + $0x28] sm:$0xff]
    %v100 = vld [vmem:[#allocation5 + $0x30] sm:$0xff]
    %v101 = vld [vmem:[#allocation5 + $0x38] sm:$0xff]
    %v102 = vld [vmem:[#allocation5 + $0x40] sm:$0xff]
    %v103 = vld [vmem:[#allocation5 + $0x48] sm:$0xff]
    %v104 = vld [vmem:[#allocation5 + $0x50] sm:$0xff]
    %v105 = vld [vmem:[#allocation5 + $0x58] sm:$0xff]
    %v106 = vld [vmem:[#allocation5 + $0x60] sm:$0xff]
    %v107 = vld [vmem:[#allocation5 + $0x68] sm:$0xff]
    %v108 = vld [vmem:[#allocation5 + $0x70] sm:$0xff]
    %v109 = vld [vmem:[#allocation5 + $0x78] sm:$0xff]
    %110 = vmatprep.subr.mxu0 0.0
    %111 = vmatpush1.msra.mxu0 %v94
    %112 = vmatprep.subr.mxu0 0.0
    %113 = vmatpush1.msra.mxu0 %v95
    %114 = vmatprep.subr.mxu0 0.0
    %115 = vmatpush1.msra.mxu0 %v96
    %116 = vmatprep.subr.mxu0 0.0
    %117 = vmatpush1.msra.mxu0 %v97
    %118 = vmatprep.subr.mxu0 0.0
    %119 = vmatpush1.msra.mxu0 %v98
    %120 = vmatprep.subr.mxu0 0.0
    %121 = vmatpush1.msra.mxu0 %v99
    %122 = vmatprep.subr.mxu0 0.0
    %123 = vmatpush1.msra.mxu0 %v100
    %124 = vmatprep.subr.mxu0 0.0
    %125 = vmatpush1.msra.mxu0 %v101
    %126 = vmatprep.subr.mxu0 0.0
    %127 = vmatpush1.msra.mxu0 %v102
    %128 = vmatprep.subr.mxu0 0.0
    %129 = vmatpush1.msra.mxu0 %v103
    %130 = vmatprep.subr.mxu0 0.0
    %131 = vmatpush1.msra.mxu0 %v104
    %132 = vmatprep.subr.mxu0 0.0
    %133 = vmatpush1.msra.mxu0 %v105
    %134 = vmatprep.subr.mxu0 0.0
    %135 = vmatpush1.msra.mxu0 %v106
    %136 = vmatprep.subr.mxu0 0.0
    %137 = vmatpush1.msra.mxu0 %v107
    %138 = vmatprep.subr.mxu0 0.0
    %139 = vmatpush1.msra.mxu0 %v108
    %140 = vmatprep.subr.mxu0 0.0
    %141 = vmatpush1.msra.mxu0 %v109
    %142 = vmatprep.subr.mxu0 0.0
    %143 = vmatpush1.msra.mxu0 0.0
    %144 = vmatprep.subr.mxu0 0.0
    %145 = vmatpush1.msra.mxu0 0.0
    %146 = vmatprep.subr.mxu0 0.0
    %147 = vmatpush1.msra.mxu0 0.0
    %148 = vmatprep.subr.mxu0 0.0
    %149 = vmatpush1.msra.mxu0 0.0
    %150 = vmatprep.subr.mxu0 0.0
    %151 = vmatpush1.msra.mxu0 0.0
    %152 = vmatprep.subr.mxu0 0.0
    %153 = vmatpush1.msra.mxu0 0.0
    %154 = vmatprep.subr.mxu0 0.0
    %155 = vmatpush1.msra.mxu0 0.0
    %156 = vmatprep.subr.mxu0 0.0
    %157 = vmatpush1.msra.mxu0 0.0
    %158 = vmatprep.subr.mxu0 0.0
    %159 = vmatpush1.msra.mxu0 0.0
    %160 = vmatprep.subr.mxu0 0.0
    %161 = vmatpush1.msra.mxu0 0.0
    %162 = vmatprep.subr.mxu0 0.0
    %163 = vmatpush1.msra.mxu0 0.0
    %164 = vmatprep.subr.mxu0 0.0
    %165 = vmatpush1.msra.mxu0 0.0
    %166 = vmatprep.subr.mxu0 0.0
    %167 = vmatpush1.msra.mxu0 0.0
    %168 = vmatprep.subr.mxu0 0.0
    %169 = vmatpush1.msra.mxu0 0.0
    %170 = vmatprep.subr.mxu0 0.0
    %171 = vmatpush1.msra.mxu0 0.0
    %172 = vmatprep.subr.mxu0 0.0
    %173 = vmatpush1.msra.mxu0 0.0
    %174 = vmatprep.mubr.f32.mxu0 0.0
    %175 = vmatmul.mubr.f32.gmra.mrb[0].mxu0 %v46
    %v176 = vpop.f32.mrb[0].mxu0
    %v177 = vadd.f32 0.0, %v176
    %v178 = vpop.f32.mrb[0].mxu0
    %179 = vmatprep.mubr.f32.mxu0 0.0
    %180 = vmatmul.mubr.f32.gmra.mrb[0].mxu0 %v47
    %v181 = vpop.f32.mrb[0].mxu0
    %v182 = vadd.f32 0.0, %v181
    %v183 = vpop.f32.mrb[0].mxu0
    %184 = vmatprep.mubr.f32.mxu0 0.0
    %185 = vmatmul.mubr.f32.gmra.mrb[0].mxu0 %v48
    %v186 = vpop.f32.mrb[0].mxu0
    %v187 = vadd.f32 0.0, %v186
    %v188 = vpop.f32.mrb[0].mxu0
    %189 = vmatprep.mubr.f32.mxu0 0.0
    %190 = vmatmul.mubr.f32.gmra.mrb[0].mxu0 %v49
    %v191 = vpop.f32.mrb[0].mxu0
    %v192 = vadd.f32 0.0, %v191
    %v193 = vpop.f32.mrb[0].mxu0
    %194 = vmatprep.mubr.f32.mxu0 0.0
    %195 = vmatmul.mubr.f32.gmra.mrb[0].mxu0 %v50
    %v196 = vpop.f32.mrb[0].mxu0
    %v197 = vadd.f32 0.0, %v196
    %v198 = vpop.f32.mrb[0].mxu0
    %199 = vmatprep.mubr.f32.mxu0 0.0
    %200 = vmatmul.mubr.f32.gmra.mrb[0].mxu0 %v51
    %v201 = vpop.f32.mrb[0].mxu0
    %v202 = vadd.f32 0.0, %v201
    %v203 = vpop.f32.mrb[0].mxu0
    %204 = vmatprep.mubr.f32.mxu0 0.0
    %205 = vmatmul.mubr.f32.gmra.mrb[0].mxu0 %v52
    %v206 = vpop.f32.mrb[0].mxu0
    %v207 = vadd.f32 0.0, %v206
    %v208 = vpop.f32.mrb[0].mxu0
    %209 = vmatprep.mubr.f32.mxu0 0.0
    %210 = vmatmul.mubr.f32.gmra.mrb[0].mxu0 %v53
    %v211 = vpop.f32.mrb[0].mxu0
    %v212 = vadd.f32 0.0, %v211
    %v213 = vpop.f32.mrb[0].mxu0
    %214 = vmatprep.mubr.f32.mxu0 0.0
    %215 = vmatmul.mubr.f32.gmra.mrb[0].mxu0 %v54
    %v216 = vpop.f32.mrb[0].mxu0
    %v217 = vadd.f32 0.0, %v216
    %v218 = vpop.f32.mrb[0].mxu0
    %219 = vmatprep.mubr.f32.mxu0 0.0
    %220 = vmatmul.mubr.f32.gmra.mrb[0].mxu0 %v55
    %v221 = vpop.f32.mrb[0].mxu0
    %v222 = vadd.f32 0.0, %v221
    %v223 = vpop.f32.mrb[0].mxu0
    %224 = vmatprep.mubr.f32.mxu0 0.0
    %225 = vmatmul.mubr.f32.gmra.mrb[0].mxu0 %v56
    %v226 = vpop.f32.mrb[0].mxu0
    %v227 = vadd.f32 0.0, %v226
    %v228 = vpop.f32.mrb[0].mxu0
    %229 = vmatprep.mubr.f32.mxu0 0.0
    %230 = vmatmul.mubr.f32.gmra.mrb[0].mxu0 %v57
    %v231 = vpop.f32.mrb[0].mxu0
    %v232 = vadd.f32 0.0, %v231
    %v233 = vpop.f32.mrb[0].mxu0
    %234 = vmatprep.mubr.f32.mxu0 0.0
    %235 = vmatmul.mubr.f32.gmra.mrb[0].mxu0 %v58
    %v236 = vpop.f32.mrb[0].mxu0
    %v237 = vadd.f32 0.0, %v236
    %v238 = vpop.f32.mrb[0].mxu0
    %239 = vmatprep.mubr.f32.mxu0 0.0
    %240 = vmatmul.mubr.f32.gmra.mrb[0].mxu0 %v59
    %v241 = vpop.f32.mrb[0].mxu0
    %v242 = vadd.f32 0.0, %v241
    %v243 = vpop.f32.mrb[0].mxu0
    %244 = vmatprep.mubr.f32.mxu0 0.0
    %245 = vmatmul.mubr.f32.gmra.mrb[0].mxu0 %v60
    %v246 = vpop.f32.mrb[0].mxu0
    %v247 = vadd.f32 0.0, %v246
    %v248 = vpop.f32.mrb[0].mxu0
    %249 = vmatprep.mubr.f32.mxu0 0.0
    %250 = vmatmul.mubr.f32.gmra.mrb[0].mxu0 %v61
    %v251 = vpop.f32.mrb[0].mxu0
    %v252 = vadd.f32 0.0, %v251
    %v253 = vpop.f32.mrb[0].mxu0
    %254 = vmatprep.mubr.f32.mxu0 0.0
    %255 = vmatmul.mubr.f32.gmra.mrb[0].mxu0 %v62
    %v256 = vpop.f32.mrb[0].mxu0
    %v257 = vadd.f32 0.0, %v256
    %v258 = vpop.f32.mrb[0].mxu0
    %259 = vmatprep.mubr.f32.mxu0 0.0
    %260 = vmatmul.mubr.f32.gmra.mrb[0].mxu0 %v63
    %v261 = vpop.f32.mrb[0].mxu0
    %v262 = vadd.f32 0.0, %v261
    %v263 = vpop.f32.mrb[0].mxu0
    %264 = vmatprep.mubr.f32.mxu0 0.0
    %265 = vmatmul.mubr.f32.gmra.mrb[0].mxu0 %v64
    %v266 = vpop.f32.mrb[0].mxu0
    %v267 = vadd.f32 0.0, %v266
    %v268 = vpop.f32.mrb[0].mxu0
    %269 = vmatprep.mubr.f32.mxu0 0.0
    %270 = vmatmul.mubr.f32.gmra.mrb[0].mxu0 %v65
    %v271 = vpop.f32.mrb[0].mxu0
    %v272 = vadd.f32 0.0, %v271
    %v273 = vpop.f32.mrb[0].mxu0
    %274 = vmatprep.mubr.f32.mxu0 0.0
    %275 = vmatmul.mubr.f32.gmra.mrb[0].mxu0 %v66
    %v276 = vpop.f32.mrb[0].mxu0
    %v277 = vadd.f32 0.0, %v276
    %v278 = vpop.f32.mrb[0].mxu0
    %279 = vmatprep.mubr.f32.mxu0 0.0
    %280 = vmatmul.mubr.f32.gmra.mrb[0].mxu0 %v67
    %v281 = vpop.f32.mrb[0].mxu0
    %v282 = vadd.f32 0.0, %v281
    %v283 = vpop.f32.mrb[0].mxu0
    %284 = vmatprep.mubr.f32.mxu0 0.0
    %285 = vmatmul.mubr.f32.gmra.mrb[0].mxu0 %v68
    %v286 = vpop.f32.mrb[0].mxu0
    %v287 = vadd.f32 0.0, %v286
    %v288 = vpop.f32.mrb[0].mxu0
    %289 = vmatprep.mubr.f32.mxu0 0.0
    %290 = vmatmul.mubr.f32.gmra.mrb[0].mxu0 %v69
    %v291 = vpop.f32.mrb[0].mxu0
    %v292 = vadd.f32 0.0, %v291
    %v293 = vpop.f32.mrb[0].mxu0
    %294 = vmatprep.mubr.f32.mxu0 0.0
    %295 = vmatmul.mubr.f32.gmra.mrb[0].mxu0 %v70
    %v296 = vpop.f32.mrb[0].mxu0
    %v297 = vadd.f32 0.0, %v296
    %v298 = vpop.f32.mrb[0].mxu0
    %299 = vmatprep.mubr.f32.mxu0 0.0
    %300 = vmatmul.mubr.f32.gmra.mrb[0].mxu0 %v71
    %v301 = vpop.f32.mrb[0].mxu0
    %v302 = vadd.f32 0.0, %v301
    %v303 = vpop.f32.mrb[0].mxu0
    %304 = vmatprep.mubr.f32.mxu0 0.0
    %305 = vmatmul.mubr.f32.gmra.mrb[0].mxu0 %v72
    %v306 = vpop.f32.mrb[0].mxu0
    %v307 = vadd.f32 0.0, %v306
    %v308 = vpop.f32.mrb[0].mxu0
    %309 = vmatprep.mubr.f32.mxu0 0.0
    %310 = vmatmul.mubr.f32.gmra.mrb[0].mxu0 %v73
    %v311 = vpop.f32.mrb[0].mxu0
    %v312 = vadd.f32 0.0, %v311
    %v313 = vpop.f32.mrb[0].mxu0
    %314 = vmatprep.mubr.f32.mxu0 0.0
    %315 = vmatmul.mubr.f32.gmra.mrb[0].mxu0 %v74
    %v316 = vpop.f32.mrb[0].mxu0
    %v317 = vadd.f32 0.0, %v316
    %v318 = vpop.f32.mrb[0].mxu0
    %319 = vmatprep.mubr.f32.mxu0 0.0
    %320 = vmatmul.mubr.f32.gmra.mrb[0].mxu0 %v75
    %v321 = vpop.f32.mrb[0].mxu0
    %v322 = vadd.f32 0.0, %v321
    %v323 = vpop.f32.mrb[0].mxu0
    %324 = vmatprep.mubr.f32.mxu0 0.0
    %325 = vmatmul.mubr.f32.gmra.mrb[0].mxu0 %v76
    %v326 = vpop.f32.mrb[0].mxu0
    %v327 = vadd.f32 0.0, %v326
    %v328 = vpop.f32.mrb[0].mxu0
    %329 = vmatprep.mubr.f32.mxu0 0.0
    %330 = vmatmul.mubr.f32.gmra.mrb[0].mxu0 %v77
    %v331 = vpop.f32.mrb[0].mxu0
    %v332 = vadd.f32 0.0, %v331
    %v333 = vpop.f32.mrb[0].mxu0
    %334 = vmatprep.mubr.f32.mxu0 0.0
    %335 = vmatmul.mubr.f32.gmra.mrb[0].mxu0 %v78
    %v336 = vpop.f32.mrb[0].mxu0
    %v337 = vadd.f32 0.0, %v336
    %v338 = vpop.f32.mrb[0].mxu0
    %339 = vmatprep.mubr.f32.mxu0 0.0
    %340 = vmatmul.mubr.f32.gmra.mrb[0].mxu0 %v79
    %v341 = vpop.f32.mrb[0].mxu0
    %v342 = vadd.f32 0.0, %v341
    %v343 = vpop.f32.mrb[0].mxu0
    %344 = vmatprep.mubr.f32.mxu0 0.0
    %345 = vmatmul.mubr.f32.gmra.mrb[0].mxu0 %v80
    %v346 = vpop.f32.mrb[0].mxu0
    %v347 = vadd.f32 0.0, %v346
    %v348 = vpop.f32.mrb[0].mxu0
    %349 = vmatprep.mubr.f32.mxu0 0.0
    %350 = vmatmul.mubr.f32.gmra.mrb[0].mxu0 %v81
    %v351 = vpop.f32.mrb[0].mxu0
    %v352 = vadd.f32 0.0, %v351
    %v353 = vpop.f32.mrb[0].mxu0
    %354 = vmatprep.mubr.f32.mxu0 0.0
    %355 = vmatmul.mubr.f32.gmra.mrb[0].mxu0 %v82
    %v356 = vpop.f32.mrb[0].mxu0
    %v357 = vadd.f32 0.0, %v356
    %v358 = vpop.f32.mrb[0].mxu0
    %359 = vmatprep.mubr.f32.mxu0 0.0
    %360 = vmatmul.mubr.f32.gmra.mrb[0].mxu0 %v83
    %v361 = vpop.f32.mrb[0].mxu0
    %v362 = vadd.f32 0.0, %v361
    %v363 = vpop.f32.mrb[0].mxu0
    %364 = vmatprep.mubr.f32.mxu0 0.0
    %365 = vmatmul.mubr.f32.gmra.mrb[0].mxu0 %v84
    %v366 = vpop.f32.mrb[0].mxu0
    %v367 = vadd.f32 0.0, %v366
    %v368 = vpop.f32.mrb[0].mxu0
    %369 = vmatprep.mubr.f32.mxu0 0.0
    %370 = vmatmul.mubr.f32.gmra.mrb[0].mxu0 %v85
    %v371 = vpop.f32.mrb[0].mxu0
    %v372 = vadd.f32 0.0, %v371
    %v373 = vpop.f32.mrb[0].mxu0
    %374 = vmatprep.mubr.f32.mxu0 0.0
    %375 = vmatmul.mubr.f32.gmra.mrb[0].mxu0 %v86
    %v376 = vpop.f32.mrb[0].mxu0
    %v377 = vadd.f32 0.0, %v376
    %v378 = vpop.f32.mrb[0].mxu0
    %379 = vmatprep.mubr.f32.mxu0 0.0
    %380 = vmatmul.mubr.f32.gmra.mrb[0].mxu0 %v87
    %v381 = vpop.f32.mrb[0].mxu0
    %v382 = vadd.f32 0.0, %v381
    %v383 = vpop.f32.mrb[0].mxu0
    %384 = vmatprep.mubr.f32.mxu0 0.0
    %385 = vmatmul.mubr.f32.gmra.mrb[0].mxu0 %v88
    %v386 = vpop.f32.mrb[0].mxu0
    %v387 = vadd.f32 0.0, %v386
    %v388 = vpop.f32.mrb[0].mxu0
    %389 = vmatprep.mubr.f32.mxu0 0.0
    %390 = vmatmul.mubr.f32.gmra.mrb[0].mxu0 %v89
    %v391 = vpop.f32.mrb[0].mxu0
    %v392 = vadd.f32 0.0, %v391
    %v393 = vpop.f32.mrb[0].mxu0
    %394 = vmatprep.mubr.f32.mxu0 0.0
    %395 = vmatmul.mubr.f32.gmra.mrb[0].mxu0 %v90
    %v396 = vpop.f32.mrb[0].mxu0
    %v397 = vadd.f32 0.0, %v396
    %v398 = vpop.f32.mrb[0].mxu0
    %399 = vmatprep.mubr.f32.mxu0 0.0
    %400 = vmatmul.mubr.f32.gmra.mrb[0].mxu0 %v91
    %v401 = vpop.f32.mrb[0].mxu0
    %v402 = vadd.f32 0.0, %v401
    %v403 = vpop.f32.mrb[0].mxu0
    %404 = vmatprep.mubr.f32.mxu0 0.0
    %405 = vmatmul.mubr.f32.gmra.mrb[0].mxu0 %v92
    %v406 = vpop.f32.mrb[0].mxu0
    %v407 = vadd.f32 0.0, %v406
    %v408 = vpop.f32.mrb[0].mxu0
    %409 = vmatprep.mubr.f32.mxu0 0.0
    %410 = vmatmul.mubr.f32.gmra.mrb[0].mxu0 %v93
    %v411 = vpop.f32.mrb[0].mxu0
    %v412 = vadd.f32 0.0, %v411
    %v413 = vpop.f32.mrb[0].mxu0
    %414 = vdwg.mxu0
    %v415 = vmax.f32 %v177, 0.0
    %v416 = vmax.f32 %v182, 0.0
    %v417 = vmax.f32 %v187, 0.0
    %v418 = vmax.f32 %v192, 0.0
    %v419 = vmax.f32 %v197, 0.0
    %v420 = vmax.f32 %v202, 0.0
    %v421 = vmax.f32 %v207, 0.0
    %v422 = vmax.f32 %v212, 0.0
    %v423 = vmax.f32 %v217, 0.0
    %v424 = vmax.f32 %v222, 0.0
    %v425 = vmax.f32 %v227, 0.0
    %v426 = vmax.f32 %v232, 0.0
    %v427 = vmax.f32 %v237, 0.0
    %v428 = vmax.f32 %v242, 0.0
    %v429 = vmax.f32 %v247, 0.0
    %v430 = vmax.f32 %v252, 0.0
    %v431 = vmax.f32 %v257, 0.0
    %v432 = vmax.f32 %v262, 0.0
    %v433 = vmax.f32 %v267, 0.0
    %v434 = vmax.f32 %v272, 0.0
    %v435 = vmax.f32 %v277, 0.0
    %v436 = vmax.f32 %v282, 0.0
    %v437 = vmax.f32 %v287, 0.0
    %v438 = vmax.f32 %v292, 0.0
    %v439 = vmax.f32 %v297, 0.0
    %v440 = vmax.f32 %v302, 0.0
    %v441 = vmax.f32 %v307, 0.0
    %v442 = vmax.f32 %v312, 0.0
    %v443 = vmax.f32 %v317, 0.0
    %v444 = vmax.f32 %v322, 0.0
    %v445 = vmax.f32 %v327, 0.0
    %v446 = vmax.f32 %v332, 0.0
    %v447 = vmax.f32 %v337, 0.0
    %v448 = vmax.f32 %v342, 0.0
    %v449 = vmax.f32 %v347, 0.0
    %v450 = vmax.f32 %v352, 0.0
    %v451 = vmax.f32 %v357, 0.0
    %v452 = vmax.f32 %v362, 0.0
    %v453 = vmax.f32 %v367, 0.0
    %v454 = vmax.f32 %v372, 0.0
    %v455 = vmax.f32 %v377, 0.0
    %v456 = vmax.f32 %v382, 0.0
    %v457 = vmax.f32 %v387, 0.0
    %v458 = vmax.f32 %v392, 0.0
    %v459 = vmax.f32 %v397, 0.0
    %v460 = vmax.f32 %v402, 0.0
    %v461 = vmax.f32 %v407, 0.0
    %v462 = vmax.f32 %v412, 0.0
    %v463 = vmax.f32 %v415, %v417
    %v464 = vmax.f32 %v416, %v418
    %v465 = vmax.f32 %v417, %v419
    %v466 = vmax.f32 %v418, %v420
    %v467 = vmax.f32 %v419, %v421
    %v468 = vmax.f32 %v420, %v422
    %v469 = vmax.f32 %v421, %v423
    %v470 = vmax.f32 %v422, %v424
    %v471 = vmax.f32 %v423, %v425
    %v472 = vmax.f32 %v424, %v426
    %v473 = vmax.f32 %v425, %v427
    %v474 = vmax.f32 %v426, %v428
    %v475 = vmax.f32 %v427, %v429
    %v476 = vmax.f32 %v428, %v430
    %v477 = vmax.f32 %v429, %v431
    %v478 = vmax.f32 %v430, %v432
    %v479 = vmax.f32 %v439, %v441
    %v480 = vmax.f32 %v440, %v442
    %v481 = vmax.f32 %v441, %v443
    %v482 = vmax.f32 %v442, %v444
    %v483 = vmax.f32 %v443, %v445
    %v484 = vmax.f32 %v444, %v446
    %v485 = vmax.f32 %v445, %v447
    %v486 = vmax.f32 %v446, %v448
    %v487 = vmax.f32 %v447, %v449
    %v488 = vmax.f32 %v448, %v450
    %v489 = vmax.f32 %v449, %v451
    %v490 = vmax.f32 %v450, %v452
    %v491 = vmax.f32 %v451, %v453
    %v492 = vmax.f32 %v452, %v454
    %v493 = vmax.f32 %v453, %v455
    %v494 = vmax.f32 %v454, %v456
    %v495 = vmax.f32 %v463, %v419
    %v496 = vmax.f32 %v464, %v420
    %v497 = vmax.f32 %v465, %v421
    %v498 = vmax.f32 %v466, %v422
    %v499 = vmax.f32 %v467, %v423
    %v500 = vmax.f32 %v468, %v424
    %v501 = vmax.f32 %v469, %v425
    %v502 = vmax.f32 %v470, %v426
    %v503 = vmax.f32 %v471, %v427
    %v504 = vmax.f32 %v472, %v428
    %v505 = vmax.f32 %v473, %v429
    %v506 = vmax.f32 %v474, %v430
    %v507 = vmax.f32 %v475, %v431
    %v508 = vmax.f32 %v476, %v432
    %v509 = vmax.f32 %v477, %v433
    %v510 = vmax.f32 %v478, %v434
    %v511 = vmax.f32 %v479, %v443
    %v512 = vmax.f32 %v480, %v444
    %v513 = vmax.f32 %v481, %v445
    %v514 = vmax.f32 %v482, %v446
    %v515 = vmax.f32 %v483, %v447
    %v516 = vmax.f32 %v484, %v448
    %v517 = vmax.f32 %v485, %v449
    %v518 = vmax.f32 %v486, %v450
    %v519 = vmax.f32 %v487, %v451
    %v520 = vmax.f32 %v488, %v452
    %v521 = vmax.f32 %v489, %v453
    %v522 = vmax.f32 %v490, %v454
    %v523 = vmax.f32 %v491, %v455
    %v524 = vmax.f32 %v492, %v456
    %v525 = vmax.f32 %v493, %v457
    %v526 = vmax.f32 %v494, %v458
    %v527 = vmax.f32 %v495, %v421
    %v528 = vmax.f32 %v496, %v422
    %v529 = vmax.f32 %v497, %v423
    %v530 = vmax.f32 %v498, %v424
    %v531 = vmax.f32 %v499, %v425
    %v532 = vmax.f32 %v500, %v426
    %v533 = vmax.f32 %v501, %v427
    %v534 = vmax.f32 %v502, %v428
    %v535 = vmax.f32 %v503, %v429
    %v536 = vmax.f32 %v504, %v430
    %v537 = vmax.f32 %v505, %v431
    %v538 = vmax.f32 %v506, %v432
    %v539 = vmax.f32 %v507, %v433
    %v540 = vmax.f32 %v508, %v434
    %v541 = vmax.f32 %v509, %v435
    %v542 = vmax.f32 %v510, %v436
    %v543 = vmax.f32 %v511, %v445
    %v544 = vmax.f32 %v512, %v446
    %v545 = vmax.f32 %v513, %v447
    %v546 = vmax.f32 %v514, %v448
    %v547 = vmax.f32 %v515, %v449
    %v548 = vmax.f32 %v516, %v450
    %v549 = vmax.f32 %v517, %v451
    %v550 = vmax.f32 %v518, %v452
    %v551 = vmax.f32 %v519, %v453
    %v552 = vmax.f32 %v520, %v454
    %v553 = vmax.f32 %v521, %v455
    %v554 = vmax.f32 %v522, %v456
    %v555 = vmax.f32 %v523, %v457
    %v556 = vmax.f32 %v524, %v458
    %v557 = vmax.f32 %v525, %v459
    %v558 = vmax.f32 %v526, %v460
    %v559 = vmax.f32 %v527, %v423
    %v560 = vmax.f32 %v528, %v424
    %v561 = vmax.f32 %v529, %v425
    %v562 = vmax.f32 %v530, %v426
    %v563 = vmax.f32 %v531, %v427
    %v564 = vmax.f32 %v532, %v428
    %v565 = vmax.f32 %v533, %v429
    %v566 = vmax.f32 %v534, %v430
    %v567 = vmax.f32 %v535, %v431
    %v568 = vmax.f32 %v536, %v432
    %v569 = vmax.f32 %v537, %v433
    %v570 = vmax.f32 %v538, %v434
    %v571 = vmax.f32 %v539, %v435
    %v572 = vmax.f32 %v540, %v436
    %v573 = vmax.f32 %v541, %v437
    %v574 = vmax.f32 %v542, %v438
    %v575 = vmax.f32 %v543, %v447
    %v576 = vmax.f32 %v544, %v448
    %v577 = vmax.f32 %v545, %v449
    %v578 = vmax.f32 %v546, %v450
    %v579 = vmax.f32 %v547, %v451
    %v580 = vmax.f32 %v548, %v452
    %v581 = vmax.f32 %v549, %v453
    %v582 = vmax.f32 %v550, %v454
    %v583 = vmax.f32 %v551, %v455
    %v584 = vmax.f32 %v552, %v456
    %v585 = vmax.f32 %v553, %v457
    %v586 = vmax.f32 %v554, %v458
    %v587 = vmax.f32 %v555, %v459
    %v588 = vmax.f32 %v556, %v460
    %v589 = vmax.f32 %v557, %v461
    %v590 = vmax.f32 %v558, %v462
    %vm623 = vcmask 1046528
    %v624 = vrot.slane %v559, 1
    %v625 = vrot.slane %v560, 1
    %v626 = vsel %vm623, %v624, %v625
    %v627 = vrot.slane %v561, 1
    %v628 = vrot.slane %v562, 1
    %v629 = vsel %vm623, %v627, %v628
    %v630 = vrot.slane %v563, 1
    %v631 = vrot.slane %v564, 1
    %v632 = vsel %vm623, %v630, %v631
    %v633 = vrot.slane %v565, 1
    %v634 = vrot.slane %v566, 1
    %v635 = vsel %vm623, %v633, %v634
    %v636 = vrot.slane %v567, 1
    %v637 = vrot.slane %v568, 1
    %v638 = vsel %vm623, %v636, %v637
    %v639 = vrot.slane %v569, 1
    %v640 = vrot.slane %v570, 1
    %v641 = vsel %vm623, %v639, %v640
    %v642 = vrot.slane %v571, 1
    %v643 = vrot.slane %v572, 1
    %v644 = vsel %vm623, %v642, %v643
    %v645 = vrot.slane %v573, 1
    %v646 = vrot.slane %v574, 1
    %v647 = vsel %vm623, %v645, %v646
    %v648 = vrot.slane %v575, 1
    %v649 = vrot.slane %v576, 1
    %v650 = vsel %vm623, %v648, %v649
    %v651 = vrot.slane %v577, 1
    %v652 = vrot.slane %v578, 1
    %v653 = vsel %vm623, %v651, %v652
    %v654 = vrot.slane %v579, 1
    %v655 = vrot.slane %v580, 1
    %v656 = vsel %vm623, %v654, %v655
    %v657 = vrot.slane %v581, 1
    %v658 = vrot.slane %v582, 1
    %v659 = vsel %vm623, %v657, %v658
    %v660 = vrot.slane %v583, 1
    %v661 = vrot.slane %v584, 1
    %v662 = vsel %vm623, %v660, %v661
    %v663 = vrot.slane %v585, 1
    %v664 = vrot.slane %v586, 1
    %v665 = vsel %vm623, %v663, %v664
    %v666 = vrot.slane %v587, 1
    %v667 = vrot.slane %v588, 1
    %v668 = vsel %vm623, %v666, %v667
    %v669 = vrot.slane %v589, 1
    %v670 = vrot.slane %v590, 1
    %v671 = vsel %vm623, %v669, %v670
    %v688 = vmax.f32 %v559, %v626
    %v689 = vmax.f32 %v561, %v629
    %v690 = vmax.f32 %v563, %v632
    %v691 = vmax.f32 %v565, %v635
    %v692 = vmax.f32 %v567, %v638
    %v693 = vmax.f32 %v569, %v641
    %v694 = vmax.f32 %v571, %v644
    %v695 = vmax.f32 %v573, %v647
    %v696 = vmax.f32 %v575, %v650
    %v697 = vmax.f32 %v577, %v653
    %v698 = vmax.f32 %v579, %v656
    %v699 = vmax.f32 %v581, %v659
    %v700 = vmax.f32 %v583, %v662
    %v701 = vmax.f32 %v585, %v665
    %v702 = vmax.f32 %v587, %v668
    %v703 = vmax.f32 %v589, %v671
    %vm704 = vcmask 1045504
    %v705 = vrot.slane %v559, 2
    %v706 = vrot.slane %v560, 2
    %v707 = vsel %vm704, %v705, %v706
    %v708 = vrot.slane %v561, 2
    %v709 = vrot.slane %v562, 2
    %v710 = vsel %vm704, %v708, %v709
    %v711 = vrot.slane %v563, 2
    %v712 = vrot.slane %v564, 2
    %v713 = vsel %vm704, %v711, %v712
    %v714 = vrot.slane %v565, 2
    %v715 = vrot.slane %v566, 2
    %v716 = vsel %vm704, %v714, %v715
    %v717 = vrot.slane %v567, 2
    %v718 = vrot.slane %v568, 2
    %v719 = vsel %vm704, %v717, %v718
    %v720 = vrot.slane %v569, 2
    %v721 = vrot.slane %v570, 2
    %v722 = vsel %vm704, %v720, %v721
    %v723 = vrot.slane %v571, 2
    %v724 = vrot.slane %v572, 2
    %v725 = vsel %vm704, %v723, %v724
    %v726 = vrot.slane %v573, 2
    %v727 = vrot.slane %v574, 2
    %v728 = vsel %vm704, %v726, %v727
    %v729 = vrot.slane %v575, 2
    %v730 = vrot.slane %v576, 2
    %v731 = vsel %vm704, %v729, %v730
    %v732 = vrot.slane %v577, 2
    %v733 = vrot.slane %v578, 2
    %v734 = vsel %vm704, %v732, %v733
    %v735 = vrot.slane %v579, 2
    %v736 = vrot.slane %v580, 2
    %v737 = vsel %vm704, %v735, %v736
    %v738 = vrot.slane %v581, 2
    %v739 = vrot.slane %v582, 2
    %v740 = vsel %vm704, %v738, %v739
    %v741 = vrot.slane %v583, 2
    %v742 = vrot.slane %v584, 2
    %v743 = vsel %vm704, %v741, %v742
    %v744 = vrot.slane %v585, 2
    %v745 = vrot.slane %v586, 2
    %v746 = vsel %vm704, %v744, %v745
    %v747 = vrot.slane %v587, 2
    %v748 = vrot.slane %v588, 2
    %v749 = vsel %vm704, %v747, %v748
    %v750 = vrot.slane %v589, 2
    %v751 = vrot.slane %v590, 2
    %v752 = vsel %vm704, %v750, %v751
    %v769 = vmax.f32 %v688, %v707
    %v770 = vmax.f32 %v689, %v710
    %v771 = vmax.f32 %v690, %v713
    %v772 = vmax.f32 %v691, %v716
    %v773 = vmax.f32 %v692, %v719
    %v774 = vmax.f32 %v693, %v722
    %v775 = vmax.f32 %v694, %v725
    %v776 = vmax.f32 %v695, %v728
    %v777 = vmax.f32 %v696, %v731
    %v778 = vmax.f32 %v697, %v734
    %v779 = vmax.f32 %v698, %v737
    %v780 = vmax.f32 %v699, %v740
    %v781 = vmax.f32 %v700, %v743
    %v782 = vmax.f32 %v701, %v746
    %v783 = vmax.f32 %v702, %v749
    %v784 = vmax.f32 %v703, %v752
    %vm785 = vcmask 1044480
    %v786 = vrot.slane %v559, 3
    %v787 = vrot.slane %v560, 3
    %v788 = vsel %vm785, %v786, %v787
    %v789 = vrot.slane %v561, 3
    %v790 = vrot.slane %v562, 3
    %v791 = vsel %vm785, %v789, %v790
    %v792 = vrot.slane %v563, 3
    %v793 = vrot.slane %v564, 3
    %v794 = vsel %vm785, %v792, %v793
    %v795 = vrot.slane %v565, 3
    %v796 = vrot.slane %v566, 3
    %v797 = vsel %vm785, %v795, %v796
    %v798 = vrot.slane %v567, 3
    %v799 = vrot.slane %v568, 3
    %v800 = vsel %vm785, %v798, %v799
    %v801 = vrot.slane %v569, 3
    %v802 = vrot.slane %v570, 3
    %v803 = vsel %vm785, %v801, %v802
    %v804 = vrot.slane %v571, 3
    %v805 = vrot.slane %v572, 3
    %v806 = vsel %vm785, %v804, %v805
    %v807 = vrot.slane %v573, 3
    %v808 = vrot.slane %v574, 3
    %v809 = vsel %vm785, %v807, %v808
    %v810 = vrot.slane %v575, 3
    %v811 = vrot.slane %v576, 3
    %v812 = vsel %vm785, %v810, %v811
    %v813 = vrot.slane %v577, 3
    %v814 = vrot.slane %v578, 3
    %v815 = vsel %vm785, %v813, %v814
    %v816 = vrot.slane %v579, 3
    %v817 = vrot.slane %v580, 3
    %v818 = vsel %vm785, %v816, %v817
    %v819 = vrot.slane %v581, 3
    %v820 = vrot.slane %v582, 3
    %v821 = vsel %vm785, %v819, %v820
    %v822 = vrot.slane %v583, 3
    %v823 = vrot.slane %v584, 3
    %v824 = vsel %vm785, %v822, %v823
    %v825 = vrot.slane %v585, 3
    %v826 = vrot.slane %v586, 3
    %v827 = vsel %vm785, %v825, %v826
    %v828 = vrot.slane %v587, 3
    %v829 = vrot.slane %v588, 3
    %v830 = vsel %vm785, %v828, %v829
    %v831 = vrot.slane %v589, 3
    %v832 = vrot.slane %v590, 3
    %v833 = vsel %vm785, %v831, %v832
    %v850 = vmax.f32 %v769, %v788
    %v851 = vmax.f32 %v770, %v791
    %v852 = vmax.f32 %v771, %v794
    %v853 = vmax.f32 %v772, %v797
    %v854 = vmax.f32 %v773, %v800
    %v855 = vmax.f32 %v774, %v803
    %v856 = vmax.f32 %v775, %v806
    %v857 = vmax.f32 %v776, %v809
    %v858 = vmax.f32 %v777, %v812
    %v859 = vmax.f32 %v778, %v815
    %v860 = vmax.f32 %v779, %v818
    %v861 = vmax.f32 %v780, %v821
    %v862 = vmax.f32 %v781, %v824
    %v863 = vmax.f32 %v782, %v827
    %v864 = vmax.f32 %v783, %v830
    %v865 = vmax.f32 %v784, %v833
    %vm866 = vcmask 1043456
    %v867 = vrot.slane %v559, 4
    %v868 = vrot.slane %v560, 4
    %v869 = vsel %vm866, %v867, %v868
    %v870 = vrot.slane %v561, 4
    %v871 = vrot.slane %v562, 4
    %v872 = vsel %vm866, %v870, %v871
    %v873 = vrot.slane %v563, 4
    %v874 = vrot.slane %v564, 4
    %v875 = vsel %vm866, %v873, %v874
    %v876 = vrot.slane %v565, 4
    %v877 = vrot.slane %v566, 4
    %v878 = vsel %vm866, %v876, %v877
    %v879 = vrot.slane %v567, 4
    %v880 = vrot.slane %v568, 4
    %v881 = vsel %vm866, %v879, %v880
    %v882 = vrot.slane %v569, 4
    %v883 = vrot.slane %v570, 4
    %v884 = vsel %vm866, %v882, %v883
    %v885 = vrot.slane %v571, 4
    %v886 = vrot.slane %v572, 4
    %v887 = vsel %vm866, %v885, %v886
    %v888 = vrot.slane %v573, 4
    %v889 = vrot.slane %v574, 4
    %v890 = vsel %vm866, %v888, %v889
    %v891 = vrot.slane %v575, 4
    %v892 = vrot.slane %v576, 4
    %v893 = vsel %vm866, %v891, %v892
    %v894 = vrot.slane %v577, 4
    %v895 = vrot.slane %v578, 4
    %v896 = vsel %vm866, %v894, %v895
    %v897 = vrot.slane %v579, 4
    %v898 = vrot.slane %v580, 4
    %v899 = vsel %vm866, %v897, %v898
    %v900 = vrot.slane %v581, 4
    %v901 = vrot.slane %v582, 4
    %v902 = vsel %vm866, %v900, %v901
    %v903 = vrot.slane %v583, 4
    %v904 = vrot.slane %v584, 4
    %v905 = vsel %vm866, %v903, %v904
    %v906 = vrot.slane %v585, 4
    %v907 = vrot.slane %v586, 4
    %v908 = vsel %vm866, %v906, %v907
    %v909 = vrot.slane %v587, 4
    %v910 = vrot.slane %v588, 4
    %v911 = vsel %vm866, %v909, %v910
    %v912 = vrot.slane %v589, 4
    %v913 = vrot.slane %v590, 4
    %v914 = vsel %vm866, %v912, %v913
    %v931 = vmax.f32 %v850, %v869
    %v932 = vmax.f32 %v851, %v872
    %v933 = vmax.f32 %v852, %v875
    %v934 = vmax.f32 %v853, %v878
    %v935 = vmax.f32 %v854, %v881
    %v936 = vmax.f32 %v855, %v884
    %v937 = vmax.f32 %v856, %v887
    %v938 = vmax.f32 %v857, %v890
    %v939 = vmax.f32 %v858, %v893
    %v940 = vmax.f32 %v859, %v896
    %v941 = vmax.f32 %v860, %v899
    %v942 = vmax.f32 %v861, %v902
    %v943 = vmax.f32 %v862, %v905
    %v944 = vmax.f32 %v863, %v908
    %v945 = vmax.f32 %v864, %v911
    %v946 = vmax.f32 %v865, %v914
    %v947 = vadd.f32 %v931, %v932
    %v948 = vadd.f32 %v947, %v933
    %v949 = vadd.f32 %v948, %v934
    %v950 = vadd.f32 %v949, %v935
    %v951 = vadd.f32 %v950, %v936
    %v952 = vadd.f32 %v951, %v937
    %v953 = vadd.f32 %v952, %v938
    %v954 = vadd.f32 %v953, %v939
    %v955 = vadd.f32 %v954, %v940
    %v956 = vadd.f32 %v955, %v941
    %v957 = vadd.f32 %v956, %v942
    %v958 = vadd.f32 %v957, %v943
    %v959 = vadd.f32 %v958, %v944
    %v960 = vadd.f32 %v959, %v945
    %v961 = vadd.f32 %v960, %v946
    %v962 = vrot.slane %v961, 4
    %v963 = vadd.f32 %v961, %v962
    %v964 = vrot.slane %v963, 2
    %v965 = vadd.f32 %v963, %v964
    %v966 = vrot.slane %v965, 1
    %v967 = vadd.f32 %v965, %v966
    %v968 = vmul.f32 %v967, 0.0078125
    %v969 = vsub.f32 %v931, %v968
    %v970 = vsub.f32 %v932, %v968
    %v971 = vsub.f32 %v933, %v968
    %v972 = vsub.f32 %v934, %v968
    %v973 = vsub.f32 %v935, %v968
    %v974 = vsub.f32 %v936, %v968
    %v975 = vsub.f32 %v937, %v968
    %v976 = vsub.f32 %v938, %v968
    %v977 = vsub.f32 %v939, %v968
    %v978 = vsub.f32 %v940, %v968
    %v979 = vsub.f32 %v941, %v968
    %v980 = vsub.f32 %v942, %v968
    %v981 = vsub.f32 %v943, %v968
    %v982 = vsub.f32 %v944, %v968
    %v983 = vsub.f32 %v945, %v968
    %v984 = vsub.f32 %v946, %v968
    %v985 = vmul.f32 %v969, %v969
    %v986 = vmul.f32 %v970, %v970
    %v987 = vmul.f32 %v971, %v971
    %v988 = vmul.f32 %v972, %v972
    %v989 = vmul.f32 %v973, %v973
    %v990 = vmul.f32 %v974, %v974
    %v991 = vmul.f32 %v975, %v975
    %v992 = vmul.f32 %v976, %v976
    %v993 = vmul.f32 %v977, %v977
    %v994 = vmul.f32 %v978, %v978
    %v995 = vmul.f32 %v979, %v979
    %v996 = vmul.f32 %v980, %v980
    %v997 = vmul.f32 %v981, %v981
    %v998 = vmul.f32 %v982, %v982
    %v999 = vmul.f32 %v983, %v983
    %v1000 = vmul.f32 %v984, %v984
    %v1001 = vadd.f32 %v985, %v986
    %v1002 = vadd.f32 %v1001, %v987
    %v1003 = vadd.f32 %v1002, %v988
    %v1004 = vadd.f32 %v1003, %v989
    %v1005 = vadd.f32 %v1004, %v990
    %v1006 = vadd.f32 %v1005, %v991
    %v1007 = vadd.f32 %v1006, %v992
    %v1008 = vadd.f32 %v1007, %v993
    %v1009 = vadd.f32 %v1008, %v994
    %v1010 = vadd.f32 %v1009, %v995
    %v1011 = vadd.f32 %v1010, %v996
    %v1012 = vadd.f32 %v1011, %v997
    %v1013 = vadd.f32 %v1012, %v998
    %v1014 = vadd.f32 %v1013, %v999
    %v1015 = vadd.f32 %v1014, %v1000
    %v1016 = vrot.slane %v1015, 4
    %v1017 = vadd.f32 %v1015, %v1016
    %v1018 = vrot.slane %v1017, 2
    %v1019 = vadd.f32 %v1017, %v1018
    %v1020 = vrot.slane %v1019, 1
    %v1021 = vadd.f32 %v1019, %v1020
    %v1022 = vmul.f32 %v1021, 0.0078125
    %v1023 = vadd.f32 %v1022, 1e-05
    %v1024 = vrsqrt.pop %v1023
    %v1025 = vmul.f32 %v969, %v1024
    %v1026 = vmul.f32 %v970, %v1024
    %v1027 = vmul.f32 %v971, %v1024
    %v1028 = vmul.f32 %v972, %v1024
    %v1029 = vmul.f32 %v973, %v1024
    %v1030 = vmul.f32 %v974, %v1024
    %v1031 = vmul.f32 %v975, %v1024
    %v1032 = vmul.f32 %v976, %v1024
    %v1033 = vmul.f32 %v977, %v1024
    %v1034 = vmul.f32 %v978, %v1024
    %v1035 = vmul.f32 %v979, %v1024
    %v1036 = vmul.f32 %v980, %v1024
    %v1037 = vmul.f32 %v981, %v1024
    %v1038 = vmul.f32 %v982, %v1024
    %v1039 = vmul.f32 %v983, %v1024
    %v1040 = vmul.f32 %v984, %v1024
    %v1041 = vld [vmem:[%s2] sm:$0x1]
    %v1043 = vlaneseq
    %v1044 = vshrl.u32 %v1043, 7
    %v1045 = vsub.s32 0, %v1044
    %v1046 = vrot.slane %v1041, %v1045
    %v1048 = vmul.f32 %v1025, %v1046
    %v1049 = vmul.f32 %v1026, %v1046
    %v1050 = vmul.f32 %v1027, %v1046
    %v1051 = vmul.f32 %v1028, %v1046
    %v1052 = vmul.f32 %v1029, %v1046
    %v1053 = vmul.f32 %v1030, %v1046
    %v1054 = vmul.f32 %v1031, %v1046
    %v1055 = vmul.f32 %v1032, %v1046
    %v1056 = vmul.f32 %v1033, %v1046
    %v1057 = vmul.f32 %v1034, %v1046
    %v1058 = vmul.f32 %v1035, %v1046
    %v1059 = vmul.f32 %v1036, %v1046
    %v1060 = vmul.f32 %v1037, %v1046
    %v1061 = vmul.f32 %v1038, %v1046
    %v1062 = vmul.f32 %v1039, %v1046
    %v1063 = vmul.f32 %v1040, %v1046
    %v1064 = vld [vmem:[%s3] sm:$0x1]
    %v1066 = vlaneseq
    %v1067 = vshrl.u32 %v1066, 7
    %v1068 = vsub.s32 0, %v1067
    %v1069 = vrot.slane %v1064, %v1068
    %v1071 = vadd.f32 %v1048, %v1069
    %v1072 = vadd.f32 %v1049, %v1069
    %v1073 = vadd.f32 %v1050, %v1069
    %v1074 = vadd.f32 %v1051, %v1069
    %v1075 = vadd.f32 %v1052, %v1069
    %v1076 = vadd.f32 %v1053, %v1069
    %v1077 = vadd.f32 %v1054, %v1069
    %v1078 = vadd.f32 %v1055, %v1069
    %v1079 = vadd.f32 %v1056, %v1069
    %v1080 = vadd.f32 %v1057, %v1069
    %v1081 = vadd.f32 %v1058, %v1069
    %v1082 = vadd.f32 %v1059, %v1069
    %v1083 = vadd.f32 %v1060, %v1069
    %v1084 = vadd.f32 %v1061, %v1069
    %v1085 = vadd.f32 %v1062, %v1069
    %v1086 = vadd.f32 %v1063, %v1069
    %1087 = vst [vmem:[#allocation7] sm:$0xff] %v1071
    %1088 = vst [vmem:[#allocation7 + $0x8] sm:$0xff] %v1072
    %1089 = vst [vmem:[#allocation7 + $0x10] sm:$0xff] %v1073
    %1090 = vst [vmem:[#allocation7 + $0x18] sm:$0xff] %v1074
    %1091 = vst [vmem:[#allocation7 + $0x20] sm:$0xff] %v1075
    %1092 = vst [vmem:[#allocation7 + $0x28] sm:$0xff] %v1076
    %1093 = vst [vmem:[#allocation7 + $0x30] sm:$0xff] %v1077
    %1094 = vst [vmem:[#allocation7 + $0x38] sm:$0xff] %v1078
    %1095 = vst [vmem:[#allocation7 + $0x40] sm:$0xff] %v1079
    %1096 = vst [vmem:[#allocation7 + $0x48] sm:$0xff] %v1080
    %1097 = vst [vmem:[#allocation7 + $0x50] sm:$0xff] %v1081
    %1098 = vst [vmem:[#allocation7 + $0x58] sm:$0xff] %v1082
    %1099 = vst [vmem:[#allocation7 + $0x60] sm:$0xff] %v1083
    %1100 = vst [vmem:[#allocation7 + $0x68] sm:$0xff] %v1084
    %1101 = vst [vmem:[#allocation7 + $0x70] sm:$0xff] %v1085
    %1102 = vst [vmem:[#allocation7 + $0x78] sm:$0xff] %v1086
    // Predicated region
    $region26: #{tpu_custom_call.1} parent=1 // pred_check
      _
    $region27: #{tpu_custom_call.1} parent=1 // pred_check_branch
      %1104 = sbr.rel (0) target = $region29
    $region28: #{tpu_custom_call.1} parent=1 // pred_region
      %s1106 = ssub.s32 2048, 2048
      %1107 = vsyncadd [#allocation4], %s1106
      %s1108 = sshll.u32 [#allocation7], 4
      %s1109 = int_to_ptr.vmem [resolvable:$true] %s1108
      %1114 = dma.vmem_to_hbm [thread:$0]  %s1109, 2048, %s4, [#allocation4], 128, 128, 8
    $region29: #{tpu_custom_call.1} parent=1 // pred_fallthru
      _
    // Predicated region
    $region30: #{tpu_custom_call.1} parent=1 // pred_check
      _
    $region31: #{tpu_custom_call.1} parent=1 // pred_check_branch
      %1116 = sbr.rel (0) target = $region33
    $region32: #{tpu_custom_call.1} parent=1 // pred_region
      %1117 = dma.done [#allocation4], 2048
    $region33: #{tpu_custom_call.1} parent=1 // pred_fallthru
      _
    %1118 = vsyncpa [#allocation3], 1
    %1119 = vsyncpa [#allocation6], 1
    %1120 = vsyncpa [#allocation4], 1

</llo_original>
